<compile_context>
chip_gen: v7x
topology: tpu7x:2x2x1
jax: 0.10.0
libtpu: 0.0.40
codegen_flags: <defaults>
</compile_context>

<pallas_src>
import functools

import jax
import jax.numpy as jnp
from jax.experimental import pallas as pl
from jax.experimental.pallas import tpu as pltpu


_VMEM_LIMIT_BYTES = 32 * 1024 * 1024      # safe scoped limit on v5e / v6e / v7x
_VMEM_WORKSET_BUDGET = 24 * 1024 * 1024   # headroom under the limit
_DEFAULT_TILE_B = 256                     # 256-aligned for v6e/v7x 2x256 MXU
_DEFAULT_TILE_V = 1024                    # large lane-dense tiles amortize grid overhead


def _round_up(x, m):
    return (x + m - 1) // m * m


def _choose_tile_v(V, K, tile_v, tile_b, in_itemsize):
    """Largest lane-dense V tile whose double-buffered working set fits VMEM."""
    tv = min(tile_v, _round_up(V, 128))
    while tv > 128:
        workset = (2 * (tile_b * K + K * tv) * in_itemsize   # emb + wfc tiles (x2 bufs)
                   + 2 * tv * 4                              # bias tile
                   + 2 * tile_b * tv * 4)                    # f32 output tile
        if workset <= _VMEM_WORKSET_BUDGET:
            break
        tv = max(128, _round_up(tv // 2, 128))
    return tv


def cbow_kernel(emb_ref, wfc_ref, bfc_ref, out_ref):
    # emb_ref: (tile_b, K)       compute dtype -- gathered (embeddings + b_emb)
    # wfc_ref: (K, tile_v)       compute dtype -- resident across the inner B axis
    # bfc_ref: (1, tile_v)       f32
    # out_ref: (tile_b, tile_v)  f32
    out_ref[...] = (
        jnp.dot(emb_ref[...], wfc_ref[...], preferred_element_type=jnp.float32)
        + bfc_ref[...]
    )


def prepare_cbow_params(wemb, bemb, wfc, bfc, *, tile_b=_DEFAULT_TILE_B,
                        tile_v=_DEFAULT_TILE_V, compute_dtype=jnp.bfloat16):
    """One-time weight prep (transpose / pad / cast), kept OFF the per-call path."""
    V, K = wfc.shape
    tv = _choose_tile_v(V, K, tile_v, tile_b, jnp.dtype(compute_dtype).itemsize)
    Vp = _round_up(V, tv)

    wfc_t = wfc.T.astype(compute_dtype)                  # (K, V) pre-transposed
    bfc_f32 = bfc.astype(jnp.float32)
    if Vp != V:
        wfc_t = jnp.pad(wfc_t, ((0, 0), (0, Vp - V)))
        bfc_f32 = jnp.pad(bfc_f32, (0, Vp - V))

    return {
        "emb_table": wemb.T.astype(jnp.float32),         # (V, E) gather table
        "bemb": bemb.astype(jnp.float32),                # (E,)
        "wfc_t": wfc_t,                                  # (K, Vp)
        "bfc": bfc_f32.reshape(1, Vp),                   # (1, Vp)
    }


@functools.partial(jax.jit,
                   static_argnames=("vocab_size", "tile_b", "tile_v", "compute_dtype"))
def cbow_forward(contexts, params, vocab_size, *, tile_b=_DEFAULT_TILE_B,
                 tile_v=_DEFAULT_TILE_V, compute_dtype=jnp.bfloat16):
    """contexts: (B, C) int32 -> logits (B, V) float32."""
    emb_table = params["emb_table"]                       # (V, E) f32
    bemb = params["bemb"]                                 # (E,)  f32
    wfc_t = params["wfc_t"]                               # (K, Vp) compute_dtype
    bfc_row = params["bfc"]                               # (1, Vp) f32

    B, C = contexts.shape
    E = emb_table.shape[1]
    K = C * E
    Vp = wfc_t.shape[1]
    V = vocab_size
    assert wfc_t.shape[0] == K

    # one_hot @ W_emb.T is just a row gather of W_emb.T; fold the embedding
    # bias here with an O(B*K) broadcast add (no K*V matvec).
    # TODO(synk): for very large B*K, fuse this gather into the kernel via
    # PrefetchScalarGridSpec(num_scalar_prefetch=1) + a pl.Element row gather.
    emb = jnp.take(emb_table, contexts, axis=0) + bemb    # (B, C, E) f32
    emb_flat = emb.reshape(B, K).astype(compute_dtype)    # (B, C*E)

    in_itemsize = jnp.dtype(compute_dtype).itemsize
    tv = _choose_tile_v(V, K, tile_v, tile_b, in_itemsize)
    assert Vp % tv == 0, (Vp, tv)
    tb = min(tile_b, _round_up(B, 8))
    Bp = _round_up(B, tb)
    if Bp != B:
        emb_flat = jnp.pad(emb_flat, ((0, Bp - B), (0, 0)))

    # Grid: V (weight-streaming) axis OUTER, B axis INNER.  The weight tile's
    # index_map depends only on the outer index, so it stays resident in VMEM
    # across all B tiles (each weight byte DMA'd once); v7x's two TensorCores
    # split the leading "parallel" V axis.
    grid = (Vp // tv, Bp // tb)

    cost = pl.CostEstimate(
        flops=2 * Bp * K * Vp,
        transcendentals=0,
        bytes_accessed=(K * Vp * in_itemsize + Bp * K * in_itemsize
                        + Bp * Vp * 4 + Vp * 4),
    )

    out = pl.pallas_call(
        cbow_kernel,
        out_shape=jax.ShapeDtypeStruct((Bp, Vp), jnp.float32),
        grid_spec=pltpu.PrefetchScalarGridSpec(
            num_scalar_prefetch=0,
            grid=grid,
            in_specs=[
                pl.BlockSpec((tb, K), lambda j, i: (i, 0)),   # activations
                pl.BlockSpec((K, tv), lambda j, i: (0, j)),   # fc weight (const over i)
                pl.BlockSpec((1, tv), lambda j, i: (0, j)),   # fc bias
            ],
            out_specs=pl.BlockSpec((tb, tv), lambda j, i: (i, j)),
        ),
        compiler_params=pltpu.CompilerParams(
            dimension_semantics=("parallel", "parallel"),
            vmem_limit_bytes=_VMEM_LIMIT_BYTES,
        ),
        cost_estimate=cost,
    )(emb_flat, wfc_t, bfc_row)

    return out[:B, :V]


def cbow_reference(contexts, wemb, bemb, wfc, bfc, vocab_size):
    onehot = jax.nn.one_hot(contexts, vocab_size, dtype=jnp.float32)   # (B, C, V)
    embed = onehot @ wemb.T + bemb                                     # (B, C, E)
    flat = embed.reshape(contexts.shape[0], -1)                        # (B, C*E)
    return flat @ wfc.T + bfc                                          # (B, V)


if __name__ == "__main__":
    # Module config (small): context_length = (2, 2) -> C = 4 positions
    context_length = (2, 2)
    C = sum(context_length)
    vocab_size = 128
    embedding_size = 32
    batch = 8

    key = jax.random.PRNGKey(0)
    k_ctx, k_we, k_be, k_wf, k_bf = jax.random.split(key, 5)

    contexts = jax.random.randint(k_ctx, (batch, C), 0, vocab_size, dtype=jnp.int32)

    # Deterministic PyTorch-Linear-style init: U(-1/sqrt(fan_in), 1/sqrt(fan_in))
    emb_bound = 1.0 / jnp.sqrt(jnp.float32(vocab_size))
    wemb = jax.random.uniform(k_we, (embedding_size, vocab_size),
                              minval=-emb_bound, maxval=emb_bound, dtype=jnp.float32)
    bemb = jax.random.uniform(k_be, (embedding_size,),
                              minval=-emb_bound, maxval=emb_bound, dtype=jnp.float32)

    fc_bound = 1.0 / jnp.sqrt(jnp.float32(C * embedding_size))
    wfc = jax.random.uniform(k_wf, (vocab_size, C * embedding_size),
                             minval=-fc_bound, maxval=fc_bound, dtype=jnp.float32)
    bfc = jax.random.uniform(k_bf, (vocab_size,),
                             minval=-fc_bound, maxval=fc_bound, dtype=jnp.float32)

    ref = jax.block_until_ready(
        cbow_reference(contexts, wemb, bemb, wfc, bfc, vocab_size))

    # Exact f32 path (tight tolerance).
    params_f32 = prepare_cbow_params(wemb, bemb, wfc, bfc,
                                     compute_dtype=jnp.float32)
    out_f32 = jax.block_until_ready(
        cbow_forward(contexts, params_f32, vocab_size, compute_dtype=jnp.float32))
    assert out_f32.shape == (batch, vocab_size), out_f32.shape
    assert jnp.allclose(out_f32, ref, atol=1e-4, rtol=1e-4), "f32 mismatch vs reference"

    # bf16 weight/activation path with f32 MXU accumulation (halved weight DMA).
    params_bf16 = prepare_cbow_params(wemb, bemb, wfc, bfc,
                                      compute_dtype=jnp.bfloat16)
    out_bf16 = jax.block_until_ready(
        cbow_forward(contexts, params_bf16, vocab_size, compute_dtype=jnp.bfloat16))
    assert out_bf16.shape == (batch, vocab_size), out_bf16.shape
    assert jnp.allclose(out_bf16, ref, atol=1e-2, rtol=1e-2), "bf16 mismatch vs reference"

    print("KERNEL_OK")
</pallas_src>

<mosaic_0001>
module attributes {stable_mosaic.version = 11 : i64} {
  func.func @cbow_kernel(%arg0: i32, %arg1: i32, %arg2: memref<8x128xf32, #tpu.memory_space<vmem>>, %arg3: memref<128x128xf32, #tpu.memory_space<vmem>>, %arg4: memref<1x128xf32, #tpu.memory_space<vmem>>, %arg5: memref<8x128xf32, #tpu.memory_space<vmem>>) attributes {dimension_semantics = [#tpu.dimension_semantics<parallel>, #tpu.dimension_semantics<parallel>], iteration_bounds = array<i64: 1, 1>, scalar_prefetch = 0 : i64, scratch_operands = 0 : i64, tpu.core_type = #tpu.core_type<tc>, window_params = [{transform_indices = @transform_0, window_bounds = array<i64: 8, 128>}, {transform_indices = @transform_1, window_bounds = array<i64: 128, 128>}, {transform_indices = @transform_2, window_bounds = array<i64: 1, 128>}, {transform_indices = @transform_3, window_bounds = array<i64: 8, 128>}]} {
    %c0 = arith.constant 0 : index
    %c0_0 = arith.constant 0 : index
    %0 = vector.load %arg2[%c0, %c0_0] : memref<8x128xf32, #tpu.memory_space<vmem>>, vector<8x128xf32>
    %c0_1 = arith.constant 0 : index
    %c0_2 = arith.constant 0 : index
    %1 = vector.load %arg3[%c0_1, %c0_2] : memref<128x128xf32, #tpu.memory_space<vmem>>, vector<128x128xf32>
    %cst = arith.constant dense<0.000000e+00> : vector<8x128xf32>
    %2 = tpu.matmul %0, %1, %cst {dimension_numbers = #tpu.dot_dimension_numbers<[1], [0], [0], [1], [0, 0, 1, 1], [], []>} : vector<8x128xf32>, vector<128x128xf32>, vector<8x128xf32> -> vector<8x128xf32>
    %c0_3 = arith.constant 0 : index
    %c0_4 = arith.constant 0 : index
    %3 = vector.load %arg4[%c0_3, %c0_4] : memref<1x128xf32, #tpu.memory_space<vmem>>, vector<1x128xf32>
    %4 = vector.broadcast %3 : vector<1x128xf32> to vector<8x128xf32>
    %5 = arith.addf %2, %4 : vector<8x128xf32>
    %c0_5 = arith.constant 0 : index
    %c0_6 = arith.constant 0 : index
    %6 = vector.load %arg5[%c0_5, %c0_6] : memref<8x128xf32, #tpu.memory_space<vmem>>, vector<8x128xf32>
    tpu.vector_store %arg5[%c0_5, %c0_6], %5 {strides = array<i32>} : memref<8x128xf32, #tpu.memory_space<vmem>>, vector<8x128xf32>,
    return
  }
  func.func @transform_0(%arg0: i32, %arg1: i32) -> (i32, i32) {
    %c0_i32 = arith.constant 0 : i32
    %c0_i32_0 = arith.constant 0 : i32
    return %arg1, %c0_i32 : i32, i32
  }
  func.func @transform_1(%arg0: i32, %arg1: i32) -> (i32, i32) {
    %c0_i32 = arith.constant 0 : i32
    %c0_i32_0 = arith.constant 0 : i32
    return %c0_i32, %arg0 : i32, i32
  }
  func.func @transform_2(%arg0: i32, %arg1: i32) -> (i32, i32) {
    %c0_i32 = arith.constant 0 : i32
    %c0_i32_0 = arith.constant 0 : i32
    return %c0_i32, %arg0 : i32, i32
  }
  func.func @transform_3(%arg0: i32, %arg1: i32) -> (i32, i32) {
    %c0_i32 = arith.constant 0 : i32
    return %arg1, %arg0 : i32, i32
  }
}

</mosaic_0001>

<llo_original>
// kernel: cbow_forward.1
$region0: #{cbow_forward.1}
  #allocation0 [shape = 'u32[]', space=smem, size = 0x4, offset = 0x4, fixed_abs, tag = 'smem constant byte address 0x4 - core index']
  #allocation1 [shape = 'u32[144,128]{1,0:T(1,128)}', space=vmem, size = 0x12000, scoped, tag = 'internal scratch']
  %s0 = inlined_call_operand.vmem [shape: f32[8,128], index: 0, kind: input, shape index: {}]
  %s1 = inlined_call_operand.vmem [shape: f32[128,128], index: 1, kind: input, shape index: {}]
  %s2 = inlined_call_operand.vmem [shape: f32[1,128], index: 2, kind: input, shape index: {}]
  %s3 = inlined_call_operand.hbm [shape: f32[8,128], index: 3, kind: output, shape index: {}]
  %s4 = sld [smem:[#allocation0]]
  $region22: #{cbow_forward.1} parent=0
    _
  %s6 = ssub.s32 1, %s4
  %s7 = scalar_select 0, %s6, %s4
  $region1: #{cbow_forward.1} parent=0
    #allocation2 [shape = 'u8[4096]{0}', space=vmem, size = 0x1000, scoped, tag = 'output window, operand 0, single buffered']
    #allocation3 [shape = 's32[1]{0}', space=sflag, size = 0x4, scoped, tag = 'scoped memory for cbow_forward.1']
    %8 = vsyncpa [#allocation3], 0
    // Predicated region
    $region2: #{cbow_forward.1} parent=1 // pred_check
      _
    $region3: #{cbow_forward.1} parent=1 // pred_check_branch
      %10 = sbr.rel (0) target = $region5
    $region4: #{cbow_forward.1} parent=1 // pred_region
      _
    $region5: #{cbow_forward.1} parent=1 // pred_fallthru
      _
    // Predicated region
    $region6: #{cbow_forward.1} parent=1 // pred_check
      _
    $region7: #{cbow_forward.1} parent=1 // pred_check_branch
      %12 = sbr.rel (0) target = $region9
    $region8: #{cbow_forward.1} parent=1 // pred_region
      _
    $region9: #{cbow_forward.1} parent=1 // pred_fallthru
      _
    // Predicated region
    $region10: #{cbow_forward.1} parent=1 // pred_check
      _
    $region11: #{cbow_forward.1} parent=1 // pred_check_branch
      %14 = sbr.rel (0) target = $region13
    $region12: #{cbow_forward.1} parent=1 // pred_region
      _
    $region13: #{cbow_forward.1} parent=1 // pred_fallthru
      _
    %v15 = vld [vmem:[%s0] sm:$0xff]
    %v16 = vld [vmem:[%s1] sm:$0xff]
    %v17 = vld [vmem:[%s1 + $0x8] sm:$0xff]
    %v18 = vld [vmem:[%s1 + $0x10] sm:$0xff]
    %v19 = vld [vmem:[%s1 + $0x18] sm:$0xff]
    %v20 = vld [vmem:[%s1 + $0x20] sm:$0xff]
    %v21 = vld [vmem:[%s1 + $0x28] sm:$0xff]
    %v22 = vld [vmem:[%s1 + $0x30] sm:$0xff]
    %v23 = vld [vmem:[%s1 + $0x38] sm:$0xff]
    %v24 = vld [vmem:[%s1 + $0x40] sm:$0xff]
    %v25 = vld [vmem:[%s1 + $0x48] sm:$0xff]
    %v26 = vld [vmem:[%s1 + $0x50] sm:$0xff]
    %v27 = vld [vmem:[%s1 + $0x58] sm:$0xff]
    %v28 = vld [vmem:[%s1 + $0x60] sm:$0xff]
    %v29 = vld [vmem:[%s1 + $0x68] sm:$0xff]
    %v30 = vld [vmem:[%s1 + $0x70] sm:$0xff]
    %v31 = vld [vmem:[%s1 + $0x78] sm:$0xff]
    %v32 = vld [vmem:[%s2] sm:$0x1]
    %v34 = vlaneseq
    %v35 = vshrl.u32 %v34, 7
    %v36 = vsub.s32 0, %v35
    %v37 = vrot.slane %v32, %v36
    %39 = vmatprep.subr.mxu0 0.0
    %40 = vmatpush1.msra.mxu0 %v16
    %41 = vmatprep.subr.mxu0 0.0
    %42 = vmatpush1.msra.mxu0 %v17
    %43 = vmatprep.subr.mxu0 0.0
    %44 = vmatpush1.msra.mxu0 %v18
    %45 = vmatprep.subr.mxu0 0.0
    %46 = vmatpush1.msra.mxu0 %v19
    %47 = vmatprep.subr.mxu0 0.0
    %48 = vmatpush1.msra.mxu0 %v20
    %49 = vmatprep.subr.mxu0 0.0
    %50 = vmatpush1.msra.mxu0 %v21
    %51 = vmatprep.subr.mxu0 0.0
    %52 = vmatpush1.msra.mxu0 %v22
    %53 = vmatprep.subr.mxu0 0.0
    %54 = vmatpush1.msra.mxu0 %v23
    %55 = vmatprep.subr.mxu0 0.0
    %56 = vmatpush1.msra.mxu0 %v24
    %57 = vmatprep.subr.mxu0 0.0
    %58 = vmatpush1.msra.mxu0 %v25
    %59 = vmatprep.subr.mxu0 0.0
    %60 = vmatpush1.msra.mxu0 %v26
    %61 = vmatprep.subr.mxu0 0.0
    %62 = vmatpush1.msra.mxu0 %v27
    %63 = vmatprep.subr.mxu0 0.0
    %64 = vmatpush1.msra.mxu0 %v28
    %65 = vmatprep.subr.mxu0 0.0
    %66 = vmatpush1.msra.mxu0 %v29
    %67 = vmatprep.subr.mxu0 0.0
    %68 = vmatpush1.msra.mxu0 %v30
    %69 = vmatprep.subr.mxu0 0.0
    %70 = vmatpush1.msra.mxu0 %v31
    %71 = vmatprep.subr.mxu0 0.0
    %72 = vmatpush1.msra.mxu0 0.0
    %73 = vmatprep.subr.mxu0 0.0
    %74 = vmatpush1.msra.mxu0 0.0
    %75 = vmatprep.subr.mxu0 0.0
    %76 = vmatpush1.msra.mxu0 0.0
    %77 = vmatprep.subr.mxu0 0.0
    %78 = vmatpush1.msra.mxu0 0.0
    %79 = vmatprep.subr.mxu0 0.0
    %80 = vmatpush1.msra.mxu0 0.0
    %81 = vmatprep.subr.mxu0 0.0
    %82 = vmatpush1.msra.mxu0 0.0
    %83 = vmatprep.subr.mxu0 0.0
    %84 = vmatpush1.msra.mxu0 0.0
    %85 = vmatprep.subr.mxu0 0.0
    %86 = vmatpush1.msra.mxu0 0.0
    %87 = vmatprep.subr.mxu0 0.0
    %88 = vmatpush1.msra.mxu0 0.0
    %89 = vmatprep.subr.mxu0 0.0
    %90 = vmatpush1.msra.mxu0 0.0
    %91 = vmatprep.subr.mxu0 0.0
    %92 = vmatpush1.msra.mxu0 0.0
    %93 = vmatprep.subr.mxu0 0.0
    %94 = vmatpush1.msra.mxu0 0.0
    %95 = vmatprep.subr.mxu0 0.0
    %96 = vmatpush1.msra.mxu0 0.0
    %97 = vmatprep.subr.mxu0 0.0
    %98 = vmatpush1.msra.mxu0 0.0
    %99 = vmatprep.subr.mxu0 0.0
    %100 = vmatpush1.msra.mxu0 0.0
    %101 = vmatprep.subr.mxu0 0.0
    %102 = vmatpush1.msra.mxu0 0.0
    %103 = vmatprep.mubr.f32.mxu0 0.0
    %104 = vmatmul.mubr.f32.gmra.mrb[0].mxu0 %v15
    %v105 = vpop.f32.mrb[0].mxu0
    %v106 = vadd.f32 %v37, %v105
    %v107 = vpop.f32.mrb[0].mxu0
    %108 = vdwg.mxu0
    %109 = vst [vmem:[#allocation2] sm:$0xff] %v106
    // Predicated region
    $region14: #{cbow_forward.1} parent=1 // pred_check
      _
    $region15: #{cbow_forward.1} parent=1 // pred_check_branch
      %111 = sbr.rel (0) target = $region17
    $region16: #{cbow_forward.1} parent=1 // pred_region
      %s113 = ssub.s32 128, 128
      %114 = vsyncadd [#allocation3], %s113
      %s116 = sshll.u32 [#allocation2], 4
      %s117 = int_to_ptr.vmem [resolvable:$true] %s116
      %119 = dma.vmem_to_hbm [thread:$0]  %s117, 128, %s3, [#allocation3]
    $region17: #{cbow_forward.1} parent=1 // pred_fallthru
      _
    // Predicated region
    $region18: #{cbow_forward.1} parent=1 // pred_check
      _
    $region19: #{cbow_forward.1} parent=1 // pred_check_branch
      %121 = sbr.rel (0) target = $region21
    $region20: #{cbow_forward.1} parent=1 // pred_region
      %122 = dma.done [#allocation3], 128
    $region21: #{cbow_forward.1} parent=1 // pred_fallthru
      _
    %123 = vsyncpa [#allocation3], 1

</llo_original>
